<compile_context>
chip_gen: v5e
topology: v5e:2x2
jax: 0.10.0
libtpu: 0.0.40
codegen_flags: <defaults>
</compile_context>

<pallas_src>
import functools

import jax
import jax.numpy as jnp
from jax import lax
from jax.experimental import pallas as pl
from jax.experimental.pallas import tpu as pltpu

IN_DIM, H1_DIM, H2_DIM, OUT_DIM = 8, 6, 4, 1

# Offsets into the packed (87,) parameter vector (weights row-major: w[k, j]).
W1_OFF = 0
B1_OFF = W1_OFF + IN_DIM * H1_DIM          # 48
W2_OFF = B1_OFF + H1_DIM                   # 54
B2_OFF = W2_OFF + H1_DIM * H2_DIM          # 78
W3_OFF = B2_OFF + H2_DIM                   # 82
B3_OFF = W3_OFF + H2_DIM * OUT_DIM         # 86
N_PARAMS = B3_OFF + OUT_DIM                # 87

CHUNK_SUB = 8                  # sublanes per in-kernel chunk (one f32 vreg row-tile)
CHUNK_ROWS = CHUNK_SUB * 128   # 1024 batch rows per chunk


def _affine(rows, params_ref, w_off, b_off, n_in, n_out, dtype):
    """rows: n_in dense (CHUNK_SUB, 128) activations -> n_out pre-activations."""
    outs = []
    for j in range(n_out):
        acc = (rows[0] * params_ref[w_off + j].astype(dtype)
               + params_ref[b_off + j].astype(dtype))
        for k in range(1, n_in):
            acc = acc + rows[k] * params_ref[w_off + k * n_out + j].astype(dtype)
        outs.append(acc)
    return outs


def hdnet_kernel(params_ref, x_ref, o_ref, *, n_chunks, compute_dtype):
    # params_ref: (87,) f32 in SMEM (folded parameters -- see pack_params).
    # x_ref:      (8, tb_sub, 128) f32 in VMEM; feature k of this tile = x_ref[k].
    # o_ref:      (tb_sub, 128) f32 -- fully lane/sublane dense store.
    def chunk(c, carry):
        off = pl.multiple_of(c * CHUNK_SUB, CHUNK_SUB)
        rows = [x_ref[k, pl.ds(off, CHUNK_SUB), :].astype(compute_dtype)
                for k in range(IN_DIM)]
        # Hidden layers: bare tanh (sigmoid affine already folded into params).
        t1 = [jnp.tanh(z) for z in
              _affine(rows, params_ref, W1_OFF, B1_OFF, IN_DIM, H1_DIM, compute_dtype)]
        t2 = [jnp.tanh(z) for z in
              _affine(t1, params_ref, W2_OFF, B2_OFF, H1_DIM, H2_DIM, compute_dtype)]
        (z3,) = _affine(t2, params_ref, W3_OFF, B3_OFF, H2_DIM, OUT_DIM, compute_dtype)
        y = jnp.tanh(z3) * 0.5 + 0.5   # only the output layer pays the sigmoid affine
        o_ref[pl.ds(off, CHUNK_SUB), :] = y.astype(o_ref.dtype)
        return carry

    lax.fori_loop(0, n_chunks, chunk, None, unroll=True)


def _choose_tile_b(batch, max_tile_b):
    """Pick a batch tile: multiple of CHUNK_ROWS, capped for VMEM, and >= 2
    grid steps when possible so both v7x TensorCores get work."""
    assert max_tile_b % CHUNK_ROWS == 0 and max_tile_b >= CHUNK_ROWS
    n_units = int(pl.cdiv(batch, CHUNK_ROWS))
    if n_units <= 1:
        return CHUNK_ROWS
    units_per_tile = min(max_tile_b // CHUNK_ROWS, int(pl.cdiv(n_units, 2)))
    return max(1, units_per_tile) * CHUNK_ROWS


def hdnet_forward_feature_major(xt, params, *, max_tile_b=32768,
                                compute_dtype=jnp.float32):
    """xt: (8, B) feature-major f32 input (avoids the extra HBM transpose pass,
    which matters on HBM-bound v5e). Returns (B, 1) f32."""
    in_dim, B = xt.shape
    assert in_dim == IN_DIM
    assert params.shape == (N_PARAMS,)

    tile_b = _choose_tile_b(B, max_tile_b)
    b_pad = tile_b * int(pl.cdiv(B, tile_b))
    n_tiles = b_pad // tile_b
    tb_sub = tile_b // 128
    n_chunks = tb_sub // CHUNK_SUB

    xt = xt.astype(jnp.float32)
    if b_pad != B:
        xt = jnp.pad(xt, ((0, 0), (0, b_pad - B)))
    xt3 = xt.reshape(IN_DIM, b_pad // 128, 128)   # batch -> dense (sublane, lane) tiles

    kernel = functools.partial(hdnet_kernel, n_chunks=n_chunks,
                               compute_dtype=compute_dtype)

    out = pl.pallas_call(
        kernel,
        out_shape=jax.ShapeDtypeStruct((b_pad // 128, 128), jnp.float32),
        grid_spec=pltpu.PrefetchScalarGridSpec(
            num_scalar_prefetch=0,
            grid=(n_tiles,),
            in_specs=[
                # One tiny scalar table, resident in SMEM for the whole call.
                pl.BlockSpec(memory_space=pltpu.MemorySpace.SMEM),
                # Batch tile: features on the leading axis, dense (tb_sub, 128) each.
                pl.BlockSpec((IN_DIM, tb_sub, 128), lambda i: (0, i, 0)),
            ],
            out_specs=pl.BlockSpec((tb_sub, 128), lambda i: (i, 0)),
        ),
        compiler_params=pltpu.CompilerParams(
            dimension_semantics=("parallel",),
        ),
    )(params.astype(jnp.float32), xt3)

    return out.reshape(b_pad, 1)[:B]


def hdnet_forward(x, params, *, max_tile_b=32768, compute_dtype=jnp.float32):
    """x: (B, 8) f32 (natural PyTorch layout), params: (87,) folded (pack_params).

    Note: the transpose below is one extra XLA HBM pass; bandwidth-bound v5e
    callers should produce feature-major data and call
    hdnet_forward_feature_major() directly."""
    B, in_dim = x.shape
    assert in_dim == IN_DIM
    return hdnet_forward_feature_major(x.astype(jnp.float32).T, params,
                                       max_tile_b=max_tile_b,
                                       compute_dtype=compute_dtype)


def pack_params(w1, b1, w2, b2, w3, b3):
    """Pack params and fold the sigmoid affine (sigmoid(z) = 0.5*tanh(z/2)+0.5)
    into them, so the kernel computes
        t1 = tanh(x  @ W1' + b1')          # == 2*sigmoid(x @ w1 + b1) - 1
        t2 = tanh(t1 @ W2' + b2')
        y  = 0.5*tanh(t2 @ W3' + b3') + 0.5
    which is numerically equivalent to the reference network."""
    w1f, b1f = 0.5 * w1, 0.5 * b1
    w2f = 0.25 * w2
    b2f = 0.25 * jnp.sum(w2, axis=0) + 0.5 * b2
    w3f = 0.25 * w3
    b3f = 0.25 * jnp.sum(w3, axis=0) + 0.5 * b3
    return jnp.concatenate([
        w1f.reshape(-1), b1f.reshape(-1),
        w2f.reshape(-1), b2f.reshape(-1),
        w3f.reshape(-1), b3f.reshape(-1),
    ]).astype(jnp.float32)


def init_params(key):
    # Mimics nn.Linear's U(-1/sqrt(fan_in), 1/sqrt(fan_in)) init.
    dims = [(IN_DIM, H1_DIM), (H1_DIM, H2_DIM), (H2_DIM, OUT_DIM)]
    params = []
    for fan_in, fan_out in dims:
        key, kw, kb = jax.random.split(key, 3)
        bound = 1.0 / jnp.sqrt(jnp.float32(fan_in))
        w = jax.random.uniform(kw, (fan_in, fan_out), jnp.float32, -bound, bound)
        b = jax.random.uniform(kb, (fan_out,), jnp.float32, -bound, bound)
        params += [w, b]
    return params


def hdnet_ref(x, w1, b1, w2, b2, w3, b3):
    h = jax.nn.sigmoid(x @ w1 + b1)
    h = jax.nn.sigmoid(h @ w2 + b2)
    return jax.nn.sigmoid(h @ w3 + b3)


if __name__ == "__main__":
    key = jax.random.PRNGKey(0)
    key, kx = jax.random.split(key)
    # Ragged batch on purpose: exercises the padding path; pads to 2048 -> a
    # 2-step grid so both v7x TensorCores get work.
    B = 1900
    x = jax.random.normal(kx, (B, IN_DIM), jnp.float32)
    w1, b1, w2, b2, w3, b3 = init_params(key)
    params = pack_params(w1, b1, w2, b2, w3, b3)

    out = hdnet_forward(x, params)
    out = jax.block_until_ready(out)

    ref = hdnet_ref(x, w1, b1, w2, b2, w3, b3)
    assert out.shape == (B, 1)
    assert jnp.allclose(out, ref, atol=1e-5, rtol=1e-5), \
        float(jnp.max(jnp.abs(out - ref)))
    print("KERNEL_OK")
</pallas_src>

<mosaic_0001>
module attributes {stable_mosaic.version = 11 : i64} {
  func.func @hdnet_kernel(%arg0: i32, %arg1: memref<87xf32, #tpu.memory_space<smem>>, %arg2: memref<8x8x128xf32, #tpu.memory_space<vmem>>, %arg3: memref<8x128xf32, #tpu.memory_space<vmem>>) attributes {dimension_semantics = [#tpu.dimension_semantics<parallel>], iteration_bounds = array<i64: 2>, scalar_prefetch = 0 : i64, scratch_operands = 0 : i64, tpu.core_type = #tpu.core_type<tc>, window_params = [{transform_indices = @transform_0, window_bounds = array<i64: 87>}, {transform_indices = @transform_1, window_bounds = array<i64: 8, 8, 128>}, {transform_indices = @transform_2, window_bounds = array<i64: 8, 128>}]} {
    %c0_i32 = arith.constant 0 : i32
    %c8_i32 = arith.constant 8 : i32
    %0 = arith.muli %c0_i32, %c8_i32 : i32
    %1 = tpu.assume_multiple %0, 8 : i32
    %c0 = arith.constant 0 : index
    %2 = arith.index_cast %1 : i32 to index
    %c0_0 = arith.constant 0 : index
    %3 = vector.load %arg2[%c0, %2, %c0_0] : memref<8x8x128xf32, #tpu.memory_space<vmem>>, vector<1x8x128xf32>
    %4 = vector.shape_cast %3 : vector<1x8x128xf32> to vector<8x128xf32>
    %c1 = arith.constant 1 : index
    %5 = arith.index_cast %1 : i32 to index
    %c0_1 = arith.constant 0 : index
    %6 = vector.load %arg2[%c1, %5, %c0_1] : memref<8x8x128xf32, #tpu.memory_space<vmem>>, vector<1x8x128xf32>
    %7 = vector.shape_cast %6 : vector<1x8x128xf32> to vector<8x128xf32>
    %c2 = arith.constant 2 : index
    %8 = arith.index_cast %1 : i32 to index
    %c0_2 = arith.constant 0 : index
    %9 = vector.load %arg2[%c2, %8, %c0_2] : memref<8x8x128xf32, #tpu.memory_space<vmem>>, vector<1x8x128xf32>
    %10 = vector.shape_cast %9 : vector<1x8x128xf32> to vector<8x128xf32>
    %c3 = arith.constant 3 : index
    %11 = arith.index_cast %1 : i32 to index
    %c0_3 = arith.constant 0 : index
    %12 = vector.load %arg2[%c3, %11, %c0_3] : memref<8x8x128xf32, #tpu.memory_space<vmem>>, vector<1x8x128xf32>
    %13 = vector.shape_cast %12 : vector<1x8x128xf32> to vector<8x128xf32>
    %c4 = arith.constant 4 : index
    %14 = arith.index_cast %1 : i32 to index
    %c0_4 = arith.constant 0 : index
    %15 = vector.load %arg2[%c4, %14, %c0_4] : memref<8x8x128xf32, #tpu.memory_space<vmem>>, vector<1x8x128xf32>
    %16 = vector.shape_cast %15 : vector<1x8x128xf32> to vector<8x128xf32>
    %c5 = arith.constant 5 : index
    %17 = arith.index_cast %1 : i32 to index
    %c0_5 = arith.constant 0 : index
    %18 = vector.load %arg2[%c5, %17, %c0_5] : memref<8x8x128xf32, #tpu.memory_space<vmem>>, vector<1x8x128xf32>
    %19 = vector.shape_cast %18 : vector<1x8x128xf32> to vector<8x128xf32>
    %c6 = arith.constant 6 : index
    %20 = arith.index_cast %1 : i32 to index
    %c0_6 = arith.constant 0 : index
    %21 = vector.load %arg2[%c6, %20, %c0_6] : memref<8x8x128xf32, #tpu.memory_space<vmem>>, vector<1x8x128xf32>
    %22 = vector.shape_cast %21 : vector<1x8x128xf32> to vector<8x128xf32>
    %c7 = arith.constant 7 : index
    %23 = arith.index_cast %1 : i32 to index
    %c0_7 = arith.constant 0 : index
    %24 = vector.load %arg2[%c7, %23, %c0_7] : memref<8x8x128xf32, #tpu.memory_space<vmem>>, vector<1x8x128xf32>
    %25 = vector.shape_cast %24 : vector<1x8x128xf32> to vector<8x128xf32>
    %c0_8 = arith.constant 0 : index
    %26 = memref.load %arg1[%c0_8] : memref<87xf32, #tpu.memory_space<smem>>
    %27 = vector.broadcast %26 : f32 to vector<8x128xf32>
    %28 = arith.mulf %4, %27 : vector<8x128xf32>
    %c48 = arith.constant 48 : index
    %29 = memref.load %arg1[%c48] : memref<87xf32, #tpu.memory_space<smem>>
    %30 = vector.broadcast %29 : f32 to vector<8x128xf32>
    %31 = arith.addf %28, %30 : vector<8x128xf32>
    %c6_9 = arith.constant 6 : index
    %32 = memref.load %arg1[%c6_9] : memref<87xf32, #tpu.memory_space<smem>>
    %33 = vector.broadcast %32 : f32 to vector<8x128xf32>
    %34 = arith.mulf %7, %33 : vector<8x128xf32>
    %35 = arith.addf %31, %34 : vector<8x128xf32>
    %c12 = arith.constant 12 : index
    %36 = memref.load %arg1[%c12] : memref<87xf32, #tpu.memory_space<smem>>
    %37 = vector.broadcast %36 : f32 to vector<8x128xf32>
    %38 = arith.mulf %10, %37 : vector<8x128xf32>
    %39 = arith.addf %35, %38 : vector<8x128xf32>
    %c18 = arith.constant 18 : index
    %40 = memref.load %arg1[%c18] : memref<87xf32, #tpu.memory_space<smem>>
    %41 = vector.broadcast %40 : f32 to vector<8x128xf32>
    %42 = arith.mulf %13, %41 : vector<8x128xf32>
    %43 = arith.addf %39, %42 : vector<8x128xf32>
    %c24 = arith.constant 24 : index
    %44 = memref.load %arg1[%c24] : memref<87xf32, #tpu.memory_space<smem>>
    %45 = vector.broadcast %44 : f32 to vector<8x128xf32>
    %46 = arith.mulf %16, %45 : vector<8x128xf32>
    %47 = arith.addf %43, %46 : vector<8x128xf32>
    %c30 = arith.constant 30 : index
    %48 = memref.load %arg1[%c30] : memref<87xf32, #tpu.memory_space<smem>>
    %49 = vector.broadcast %48 : f32 to vector<8x128xf32>
    %50 = arith.mulf %19, %49 : vector<8x128xf32>
    %51 = arith.addf %47, %50 : vector<8x128xf32>
    %c36 = arith.constant 36 : index
    %52 = memref.load %arg1[%c36] : memref<87xf32, #tpu.memory_space<smem>>
    %53 = vector.broadcast %52 : f32 to vector<8x128xf32>
    %54 = arith.mulf %22, %53 : vector<8x128xf32>
    %55 = arith.addf %51, %54 : vector<8x128xf32>
    %c42 = arith.constant 42 : index
    %56 = memref.load %arg1[%c42] : memref<87xf32, #tpu.memory_space<smem>>
    %57 = vector.broadcast %56 : f32 to vector<8x128xf32>
    %58 = arith.mulf %25, %57 : vector<8x128xf32>
    %59 = arith.addf %55, %58 : vector<8x128xf32>
    %c1_10 = arith.constant 1 : index
    %60 = memref.load %arg1[%c1_10] : memref<87xf32, #tpu.memory_space<smem>>
    %61 = vector.broadcast %60 : f32 to vector<8x128xf32>
    %62 = arith.mulf %4, %61 : vector<8x128xf32>
    %c49 = arith.constant 49 : index
    %63 = memref.load %arg1[%c49] : memref<87xf32, #tpu.memory_space<smem>>
    %64 = vector.broadcast %63 : f32 to vector<8x128xf32>
    %65 = arith.addf %62, %64 : vector<8x128xf32>
    %c7_11 = arith.constant 7 : index
    %66 = memref.load %arg1[%c7_11] : memref<87xf32, #tpu.memory_space<smem>>
    %67 = vector.broadcast %66 : f32 to vector<8x128xf32>
    %68 = arith.mulf %7, %67 : vector<8x128xf32>
    %69 = arith.addf %65, %68 : vector<8x128xf32>
    %c13 = arith.constant 13 : index
    %70 = memref.load %arg1[%c13] : memref<87xf32, #tpu.memory_space<smem>>
    %71 = vector.broadcast %70 : f32 to vector<8x128xf32>
    %72 = arith.mulf %10, %71 : vector<8x128xf32>
    %73 = arith.addf %69, %72 : vector<8x128xf32>
    %c19 = arith.constant 19 : index
    %74 = memref.load %arg1[%c19] : memref<87xf32, #tpu.memory_space<smem>>
    %75 = vector.broadcast %74 : f32 to vector<8x128xf32>
    %76 = arith.mulf %13, %75 : vector<8x128xf32>
    %77 = arith.addf %73, %76 : vector<8x128xf32>
    %c25 = arith.constant 25 : index
    %78 = memref.load %arg1[%c25] : memref<87xf32, #tpu.memory_space<smem>>
    %79 = vector.broadcast %78 : f32 to vector<8x128xf32>
    %80 = arith.mulf %16, %79 : vector<8x128xf32>
    %81 = arith.addf %77, %80 : vector<8x128xf32>
    %c31 = arith.constant 31 : index
    %82 = memref.load %arg1[%c31] : memref<87xf32, #tpu.memory_space<smem>>
    %83 = vector.broadcast %82 : f32 to vector<8x128xf32>
    %84 = arith.mulf %19, %83 : vector<8x128xf32>
    %85 = arith.addf %81, %84 : vector<8x128xf32>
    %c37 = arith.constant 37 : index
    %86 = memref.load %arg1[%c37] : memref<87xf32, #tpu.memory_space<smem>>
    %87 = vector.broadcast %86 : f32 to vector<8x128xf32>
    %88 = arith.mulf %22, %87 : vector<8x128xf32>
    %89 = arith.addf %85, %88 : vector<8x128xf32>
    %c43 = arith.constant 43 : index
    %90 = memref.load %arg1[%c43] : memref<87xf32, #tpu.memory_space<smem>>
    %91 = vector.broadcast %90 : f32 to vector<8x128xf32>
    %92 = arith.mulf %25, %91 : vector<8x128xf32>
    %93 = arith.addf %89, %92 : vector<8x128xf32>
    %c2_12 = arith.constant 2 : index
    %94 = memref.load %arg1[%c2_12] : memref<87xf32, #tpu.memory_space<smem>>
    %95 = vector.broadcast %94 : f32 to vector<8x128xf32>
    %96 = arith.mulf %4, %95 : vector<8x128xf32>
    %c50 = arith.constant 50 : index
    %97 = memref.load %arg1[%c50] : memref<87xf32, #tpu.memory_space<smem>>
    %98 = vector.broadcast %97 : f32 to vector<8x128xf32>
    %99 = arith.addf %96, %98 : vector<8x128xf32>
    %c8 = arith.constant 8 : index
    %100 = memref.load %arg1[%c8] : memref<87xf32, #tpu.memory_space<smem>>
    %101 = vector.broadcast %100 : f32 to vector<8x128xf32>
    %102 = arith.mulf %7, %101 : vector<8x128xf32>
    %103 = arith.addf %99, %102 : vector<8x128xf32>
    %c14 = arith.constant 14 : index
    %104 = memref.load %arg1[%c14] : memref<87xf32, #tpu.memory_space<smem>>
    %105 = vector.broadcast %104 : f32 to vector<8x128xf32>
    %106 = arith.mulf %10, %105 : vector<8x128xf32>
    %107 = arith.addf %103, %106 : vector<8x128xf32>
    %c20 = arith.constant 20 : index
    %108 = memref.load %arg1[%c20] : memref<87xf32, #tpu.memory_space<smem>>
    %109 = vector.broadcast %108 : f32 to vector<8x128xf32>
    %110 = arith.mulf %13, %109 : vector<8x128xf32>
    %111 = arith.addf %107, %110 : vector<8x128xf32>
    %c26 = arith.constant 26 : index
    %112 = memref.load %arg1[%c26] : memref<87xf32, #tpu.memory_space<smem>>
    %113 = vector.broadcast %112 : f32 to vector<8x128xf32>
    %114 = arith.mulf %16, %113 : vector<8x128xf32>
    %115 = arith.addf %111, %114 : vector<8x128xf32>
    %c32 = arith.constant 32 : index
    %116 = memref.load %arg1[%c32] : memref<87xf32, #tpu.memory_space<smem>>
    %117 = vector.broadcast %116 : f32 to vector<8x128xf32>
    %118 = arith.mulf %19, %117 : vector<8x128xf32>
    %119 = arith.addf %115, %118 : vector<8x128xf32>
    %c38 = arith.constant 38 : index
    %120 = memref.load %arg1[%c38] : memref<87xf32, #tpu.memory_space<smem>>
    %121 = vector.broadcast %120 : f32 to vector<8x128xf32>
    %122 = arith.mulf %22, %121 : vector<8x128xf32>
    %123 = arith.addf %119, %122 : vector<8x128xf32>
    %c44 = arith.constant 44 : index
    %124 = memref.load %arg1[%c44] : memref<87xf32, #tpu.memory_space<smem>>
    %125 = vector.broadcast %124 : f32 to vector<8x128xf32>
    %126 = arith.mulf %25, %125 : vector<8x128xf32>
    %127 = arith.addf %123, %126 : vector<8x128xf32>
    %c3_13 = arith.constant 3 : index
    %128 = memref.load %arg1[%c3_13] : memref<87xf32, #tpu.memory_space<smem>>
    %129 = vector.broadcast %128 : f32 to vector<8x128xf32>
    %130 = arith.mulf %4, %129 : vector<8x128xf32>
    %c51 = arith.constant 51 : index
    %131 = memref.load %arg1[%c51] : memref<87xf32, #tpu.memory_space<smem>>
    %132 = vector.broadcast %131 : f32 to vector<8x128xf32>
    %133 = arith.addf %130, %132 : vector<8x128xf32>
    %c9 = arith.constant 9 : index
    %134 = memref.load %arg1[%c9] : memref<87xf32, #tpu.memory_space<smem>>
    %135 = vector.broadcast %134 : f32 to vector<8x128xf32>
    %136 = arith.mulf %7, %135 : vector<8x128xf32>
    %137 = arith.addf %133, %136 : vector<8x128xf32>
    %c15 = arith.constant 15 : index
    %138 = memref.load %arg1[%c15] : memref<87xf32, #tpu.memory_space<smem>>
    %139 = vector.broadcast %138 : f32 to vector<8x128xf32>
    %140 = arith.mulf %10, %139 : vector<8x128xf32>
    %141 = arith.addf %137, %140 : vector<8x128xf32>
    %c21 = arith.constant 21 : index
    %142 = memref.load %arg1[%c21] : memref<87xf32, #tpu.memory_space<smem>>
    %143 = vector.broadcast %142 : f32 to vector<8x128xf32>
    %144 = arith.mulf %13, %143 : vector<8x128xf32>
    %145 = arith.addf %141, %144 : vector<8x128xf32>
    %c27 = arith.constant 27 : index
    %146 = memref.load %arg1[%c27] : memref<87xf32, #tpu.memory_space<smem>>
    %147 = vector.broadcast %146 : f32 to vector<8x128xf32>
    %148 = arith.mulf %16, %147 : vector<8x128xf32>
    %149 = arith.addf %145, %148 : vector<8x128xf32>
    %c33 = arith.constant 33 : index
    %150 = memref.load %arg1[%c33] : memref<87xf32, #tpu.memory_space<smem>>
    %151 = vector.broadcast %150 : f32 to vector<8x128xf32>
    %152 = arith.mulf %19, %151 : vector<8x128xf32>
    %153 = arith.addf %149, %152 : vector<8x128xf32>
    %c39 = arith.constant 39 : index
    %154 = memref.load %arg1[%c39] : memref<87xf32, #tpu.memory_space<smem>>
    %155 = vector.broadcast %154 : f32 to vector<8x128xf32>
    %156 = arith.mulf %22, %155 : vector<8x128xf32>
    %157 = arith.addf %153, %156 : vector<8x128xf32>
    %c45 = arith.constant 45 : index
    %158 = memref.load %arg1[%c45] : memref<87xf32, #tpu.memory_space<smem>>
    %159 = vector.broadcast %158 : f32 to vector<8x128xf32>
    %160 = arith.mulf %25, %159 : vector<8x128xf32>
    %161 = arith.addf %157, %160 : vector<8x128xf32>
    %c4_14 = arith.constant 4 : index
    %162 = memref.load %arg1[%c4_14] : memref<87xf32, #tpu.memory_space<smem>>
    %163 = vector.broadcast %162 : f32 to vector<8x128xf32>
    %164 = arith.mulf %4, %163 : vector<8x128xf32>
    %c52 = arith.constant 52 : index
    %165 = memref.load %arg1[%c52] : memref<87xf32, #tpu.memory_space<smem>>
    %166 = vector.broadcast %165 : f32 to vector<8x128xf32>
    %167 = arith.addf %164, %166 : vector<8x128xf32>
    %c10 = arith.constant 10 : index
    %168 = memref.load %arg1[%c10] : memref<87xf32, #tpu.memory_space<smem>>
    %169 = vector.broadcast %168 : f32 to vector<8x128xf32>
    %170 = arith.mulf %7, %169 : vector<8x128xf32>
    %171 = arith.addf %167, %170 : vector<8x128xf32>
    %c16 = arith.constant 16 : index
    %172 = memref.load %arg1[%c16] : memref<87xf32, #tpu.memory_space<smem>>
    %173 = vector.broadcast %172 : f32 to vector<8x128xf32>
    %174 = arith.mulf %10, %173 : vector<8x128xf32>
    %175 = arith.addf %171, %174 : vector<8x128xf32>
    %c22 = arith.constant 22 : index
    %176 = memref.load %arg1[%c22] : memref<87xf32, #tpu.memory_space<smem>>
    %177 = vector.broadcast %176 : f32 to vector<8x128xf32>
    %178 = arith.mulf %13, %177 : vector<8x128xf32>
    %179 = arith.addf %175, %178 : vector<8x128xf32>
    %c28 = arith.constant 28 : index
    %180 = memref.load %arg1[%c28] : memref<87xf32, #tpu.memory_space<smem>>
    %181 = vector.broadcast %180 : f32 to vector<8x128xf32>
    %182 = arith.mulf %16, %181 : vector<8x128xf32>
    %183 = arith.addf %179, %182 : vector<8x128xf32>
    %c34 = arith.constant 34 : index
    %184 = memref.load %arg1[%c34] : memref<87xf32, #tpu.memory_space<smem>>
    %185 = vector.broadcast %184 : f32 to vector<8x128xf32>
    %186 = arith.mulf %19, %185 : vector<8x128xf32>
    %187 = arith.addf %183, %186 : vector<8x128xf32>
    %c40 = arith.constant 40 : index
    %188 = memref.load %arg1[%c40] : memref<87xf32, #tpu.memory_space<smem>>
    %189 = vector.broadcast %188 : f32 to vector<8x128xf32>
    %190 = arith.mulf %22, %189 : vector<8x128xf32>
    %191 = arith.addf %187, %190 : vector<8x128xf32>
    %c46 = arith.constant 46 : index
    %192 = memref.load %arg1[%c46] : memref<87xf32, #tpu.memory_space<smem>>
    %193 = vector.broadcast %192 : f32 to vector<8x128xf32>
    %194 = arith.mulf %25, %193 : vector<8x128xf32>
    %195 = arith.addf %191, %194 : vector<8x128xf32>
    %c5_15 = arith.constant 5 : index
    %196 = memref.load %arg1[%c5_15] : memref<87xf32, #tpu.memory_space<smem>>
    %197 = vector.broadcast %196 : f32 to vector<8x128xf32>
    %198 = arith.mulf %4, %197 : vector<8x128xf32>
    %c53 = arith.constant 53 : index
    %199 = memref.load %arg1[%c53] : memref<87xf32, #tpu.memory_space<smem>>
    %200 = vector.broadcast %199 : f32 to vector<8x128xf32>
    %201 = arith.addf %198, %200 : vector<8x128xf32>
    %c11 = arith.constant 11 : index
    %202 = memref.load %arg1[%c11] : memref<87xf32, #tpu.memory_space<smem>>
    %203 = vector.broadcast %202 : f32 to vector<8x128xf32>
    %204 = arith.mulf %7, %203 : vector<8x128xf32>
    %205 = arith.addf %201, %204 : vector<8x128xf32>
    %c17 = arith.constant 17 : index
    %206 = memref.load %arg1[%c17] : memref<87xf32, #tpu.memory_space<smem>>
    %207 = vector.broadcast %206 : f32 to vector<8x128xf32>
    %208 = arith.mulf %10, %207 : vector<8x128xf32>
    %209 = arith.addf %205, %208 : vector<8x128xf32>
    %c23 = arith.constant 23 : index
    %210 = memref.load %arg1[%c23] : memref<87xf32, #tpu.memory_space<smem>>
    %211 = vector.broadcast %210 : f32 to vector<8x128xf32>
    %212 = arith.mulf %13, %211 : vector<8x128xf32>
    %213 = arith.addf %209, %212 : vector<8x128xf32>
    %c29 = arith.constant 29 : index
    %214 = memref.load %arg1[%c29] : memref<87xf32, #tpu.memory_space<smem>>
    %215 = vector.broadcast %214 : f32 to vector<8x128xf32>
    %216 = arith.mulf %16, %215 : vector<8x128xf32>
    %217 = arith.addf %213, %216 : vector<8x128xf32>
    %c35 = arith.constant 35 : index
    %218 = memref.load %arg1[%c35] : memref<87xf32, #tpu.memory_space<smem>>
    %219 = vector.broadcast %218 : f32 to vector<8x128xf32>
    %220 = arith.mulf %19, %219 : vector<8x128xf32>
    %221 = arith.addf %217, %220 : vector<8x128xf32>
    %c41 = arith.constant 41 : index
    %222 = memref.load %arg1[%c41] : memref<87xf32, #tpu.memory_space<smem>>
    %223 = vector.broadcast %222 : f32 to vector<8x128xf32>
    %224 = arith.mulf %22, %223 : vector<8x128xf32>
    %225 = arith.addf %221, %224 : vector<8x128xf32>
    %c47 = arith.constant 47 : index
    %226 = memref.load %arg1[%c47] : memref<87xf32, #tpu.memory_space<smem>>
    %227 = vector.broadcast %226 : f32 to vector<8x128xf32>
    %228 = arith.mulf %25, %227 : vector<8x128xf32>
    %229 = arith.addf %225, %228 : vector<8x128xf32>
    %230 = math.tanh %59 : vector<8x128xf32>
    %231 = math.tanh %93 : vector<8x128xf32>
    %232 = math.tanh %127 : vector<8x128xf32>
    %233 = math.tanh %161 : vector<8x128xf32>
    %234 = math.tanh %195 : vector<8x128xf32>
    %235 = math.tanh %229 : vector<8x128xf32>
    %c54 = arith.constant 54 : index
    %236 = memref.load %arg1[%c54] : memref<87xf32, #tpu.memory_space<smem>>
    %237 = vector.broadcast %236 : f32 to vector<8x128xf32>
    %238 = arith.mulf %230, %237 : vector<8x128xf32>
    %c78 = arith.constant 78 : index
    %239 = memref.load %arg1[%c78] : memref<87xf32, #tpu.memory_space<smem>>
    %240 = vector.broadcast %239 : f32 to vector<8x128xf32>
    %241 = arith.addf %238, %240 : vector<8x128xf32>
    %c58 = arith.constant 58 : index
    %242 = memref.load %arg1[%c58] : memref<87xf32, #tpu.memory_space<smem>>
    %243 = vector.broadcast %242 : f32 to vector<8x128xf32>
    %244 = arith.mulf %231, %243 : vector<8x128xf32>
    %245 = arith.addf %241, %244 : vector<8x128xf32>
    %c62 = arith.constant 62 : index
    %246 = memref.load %arg1[%c62] : memref<87xf32, #tpu.memory_space<smem>>
    %247 = vector.broadcast %246 : f32 to vector<8x128xf32>
    %248 = arith.mulf %232, %247 : vector<8x128xf32>
    %249 = arith.addf %245, %248 : vector<8x128xf32>
    %c66 = arith.constant 66 : index
    %250 = memref.load %arg1[%c66] : memref<87xf32, #tpu.memory_space<smem>>
    %251 = vector.broadcast %250 : f32 to vector<8x128xf32>
    %252 = arith.mulf %233, %251 : vector<8x128xf32>
    %253 = arith.addf %249, %252 : vector<8x128xf32>
    %c70 = arith.constant 70 : index
    %254 = memref.load %arg1[%c70] : memref<87xf32, #tpu.memory_space<smem>>
    %255 = vector.broadcast %254 : f32 to vector<8x128xf32>
    %256 = arith.mulf %234, %255 : vector<8x128xf32>
    %257 = arith.addf %253, %256 : vector<8x128xf32>
    %c74 = arith.constant 74 : index
    %258 = memref.load %arg1[%c74] : memref<87xf32, #tpu.memory_space<smem>>
    %259 = vector.broadcast %258 : f32 to vector<8x128xf32>
    %260 = arith.mulf %235, %259 : vector<8x128xf32>
    %261 = arith.addf %257, %260 : vector<8x128xf32>
    %c55 = arith.constant 55 : index
    %262 = memref.load %arg1[%c55] : memref<87xf32, #tpu.memory_space<smem>>
    %263 = vector.broadcast %262 : f32 to vector<8x128xf32>
    %264 = arith.mulf %230, %263 : vector<8x128xf32>
    %c79 = arith.constant 79 : index
    %265 = memref.load %arg1[%c79] : memref<87xf32, #tpu.memory_space<smem>>
    %266 = vector.broadcast %265 : f32 to vector<8x128xf32>
    %267 = arith.addf %264, %266 : vector<8x128xf32>
    %c59 = arith.constant 59 : index
    %268 = memref.load %arg1[%c59] : memref<87xf32, #tpu.memory_space<smem>>
    %269 = vector.broadcast %268 : f32 to vector<8x128xf32>
    %270 = arith.mulf %231, %269 : vector<8x128xf32>
    %271 = arith.addf %267, %270 : vector<8x128xf32>
    %c63 = arith.constant 63 : index
    %272 = memref.load %arg1[%c63] : memref<87xf32, #tpu.memory_space<smem>>
    %273 = vector.broadcast %272 : f32 to vector<8x128xf32>
    %274 = arith.mulf %232, %273 : vector<8x128xf32>
    %275 = arith.addf %271, %274 : vector<8x128xf32>
    %c67 = arith.constant 67 : index
    %276 = memref.load %arg1[%c67] : memref<87xf32, #tpu.memory_space<smem>>
    %277 = vector.broadcast %276 : f32 to vector<8x128xf32>
    %278 = arith.mulf %233, %277 : vector<8x128xf32>
    %279 = arith.addf %275, %278 : vector<8x128xf32>
    %c71 = arith.constant 71 : index
    %280 = memref.load %arg1[%c71] : memref<87xf32, #tpu.memory_space<smem>>
    %281 = vector.broadcast %280 : f32 to vector<8x128xf32>
    %282 = arith.mulf %234, %281 : vector<8x128xf32>
    %283 = arith.addf %279, %282 : vector<8x128xf32>
    %c75 = arith.constant 75 : index
    %284 = memref.load %arg1[%c75] : memref<87xf32, #tpu.memory_space<smem>>
    %285 = vector.broadcast %284 : f32 to vector<8x128xf32>
    %286 = arith.mulf %235, %285 : vector<8x128xf32>
    %287 = arith.addf %283, %286 : vector<8x128xf32>
    %c56 = arith.constant 56 : index
    %288 = memref.load %arg1[%c56] : memref<87xf32, #tpu.memory_space<smem>>
    %289 = vector.broadcast %288 : f32 to vector<8x128xf32>
    %290 = arith.mulf %230, %289 : vector<8x128xf32>
    %c80 = arith.constant 80 : index
    %291 = memref.load %arg1[%c80] : memref<87xf32, #tpu.memory_space<smem>>
    %292 = vector.broadcast %291 : f32 to vector<8x128xf32>
    %293 = arith.addf %290, %292 : vector<8x128xf32>
    %c60 = arith.constant 60 : index
    %294 = memref.load %arg1[%c60] : memref<87xf32, #tpu.memory_space<smem>>
    %295 = vector.broadcast %294 : f32 to vector<8x128xf32>
    %296 = arith.mulf %231, %295 : vector<8x128xf32>
    %297 = arith.addf %293, %296 : vector<8x128xf32>
    %c64 = arith.constant 64 : index
    %298 = memref.load %arg1[%c64] : memref<87xf32, #tpu.memory_space<smem>>
    %299 = vector.broadcast %298 : f32 to vector<8x128xf32>
    %300 = arith.mulf %232, %299 : vector<8x128xf32>
    %301 = arith.addf %297, %300 : vector<8x128xf32>
    %c68 = arith.constant 68 : index
    %302 = memref.load %arg1[%c68] : memref<87xf32, #tpu.memory_space<smem>>
    %303 = vector.broadcast %302 : f32 to vector<8x128xf32>
    %304 = arith.mulf %233, %303 : vector<8x128xf32>
    %305 = arith.addf %301, %304 : vector<8x128xf32>
    %c72 = arith.constant 72 : index
    %306 = memref.load %arg1[%c72] : memref<87xf32, #tpu.memory_space<smem>>
    %307 = vector.broadcast %306 : f32 to vector<8x128xf32>
    %308 = arith.mulf %234, %307 : vector<8x128xf32>
    %309 = arith.addf %305, %308 : vector<8x128xf32>
    %c76 = arith.constant 76 : index
    %310 = memref.load %arg1[%c76] : memref<87xf32, #tpu.memory_space<smem>>
    %311 = vector.broadcast %310 : f32 to vector<8x128xf32>
    %312 = arith.mulf %235, %311 : vector<8x128xf32>
    %313 = arith.addf %309, %312 : vector<8x128xf32>
    %c57 = arith.constant 57 : index
    %314 = memref.load %arg1[%c57] : memref<87xf32, #tpu.memory_space<smem>>
    %315 = vector.broadcast %314 : f32 to vector<8x128xf32>
    %316 = arith.mulf %230, %315 : vector<8x128xf32>
    %c81 = arith.constant 81 : index
    %317 = memref.load %arg1[%c81] : memref<87xf32, #tpu.memory_space<smem>>
    %318 = vector.broadcast %317 : f32 to vector<8x128xf32>
    %319 = arith.addf %316, %318 : vector<8x128xf32>
    %c61 = arith.constant 61 : index
    %320 = memref.load %arg1[%c61] : memref<87xf32, #tpu.memory_space<smem>>
    %321 = vector.broadcast %320 : f32 to vector<8x128xf32>
    %322 = arith.mulf %231, %321 : vector<8x128xf32>
    %323 = arith.addf %319, %322 : vector<8x128xf32>
    %c65 = arith.constant 65 : index
    %324 = memref.load %arg1[%c65] : memref<87xf32, #tpu.memory_space<smem>>
    %325 = vector.broadcast %324 : f32 to vector<8x128xf32>
    %326 = arith.mulf %232, %325 : vector<8x128xf32>
    %327 = arith.addf %323, %326 : vector<8x128xf32>
    %c69 = arith.constant 69 : index
    %328 = memref.load %arg1[%c69] : memref<87xf32, #tpu.memory_space<smem>>
    %329 = vector.broadcast %328 : f32 to vector<8x128xf32>
    %330 = arith.mulf %233, %329 : vector<8x128xf32>
    %331 = arith.addf %327, %330 : vector<8x128xf32>
    %c73 = arith.constant 73 : index
    %332 = memref.load %arg1[%c73] : memref<87xf32, #tpu.memory_space<smem>>
    %333 = vector.broadcast %332 : f32 to vector<8x128xf32>
    %334 = arith.mulf %234, %333 : vector<8x128xf32>
    %335 = arith.addf %331, %334 : vector<8x128xf32>
    %c77 = arith.constant 77 : index
    %336 = memref.load %arg1[%c77] : memref<87xf32, #tpu.memory_space<smem>>
    %337 = vector.broadcast %336 : f32 to vector<8x128xf32>
    %338 = arith.mulf %235, %337 : vector<8x128xf32>
    %339 = arith.addf %335, %338 : vector<8x128xf32>
    %340 = math.tanh %261 : vector<8x128xf32>
    %341 = math.tanh %287 : vector<8x128xf32>
    %342 = math.tanh %313 : vector<8x128xf32>
    %343 = math.tanh %339 : vector<8x128xf32>
    %c82 = arith.constant 82 : index
    %344 = memref.load %arg1[%c82] : memref<87xf32, #tpu.memory_space<smem>>
    %345 = vector.broadcast %344 : f32 to vector<8x128xf32>
    %346 = arith.mulf %340, %345 : vector<8x128xf32>
    %c86 = arith.constant 86 : index
    %347 = memref.load %arg1[%c86] : memref<87xf32, #tpu.memory_space<smem>>
    %348 = vector.broadcast %347 : f32 to vector<8x128xf32>
    %349 = arith.addf %346, %348 : vector<8x128xf32>
    %c83 = arith.constant 83 : index
    %350 = memref.load %arg1[%c83] : memref<87xf32, #tpu.memory_space<smem>>
    %351 = vector.broadcast %350 : f32 to vector<8x128xf32>
    %352 = arith.mulf %341, %351 : vector<8x128xf32>
    %353 = arith.addf %349, %352 : vector<8x128xf32>
    %c84 = arith.constant 84 : index
    %354 = memref.load %arg1[%c84] : memref<87xf32, #tpu.memory_space<smem>>
    %355 = vector.broadcast %354 : f32 to vector<8x128xf32>
    %356 = arith.mulf %342, %355 : vector<8x128xf32>
    %357 = arith.addf %353, %356 : vector<8x128xf32>
    %c85 = arith.constant 85 : index
    %358 = memref.load %arg1[%c85] : memref<87xf32, #tpu.memory_space<smem>>
    %359 = vector.broadcast %358 : f32 to vector<8x128xf32>
    %360 = arith.mulf %343, %359 : vector<8x128xf32>
    %361 = arith.addf %357, %360 : vector<8x128xf32>
    %362 = math.tanh %361 : vector<8x128xf32>
    %cst = arith.constant 5.000000e-01 : f32
    %363 = vector.broadcast %cst : f32 to vector<8x128xf32>
    %364 = arith.mulf %362, %363 : vector<8x128xf32>
    %cst_16 = arith.constant 5.000000e-01 : f32
    %365 = vector.broadcast %cst_16 : f32 to vector<8x128xf32>
    %366 = arith.addf %364, %365 : vector<8x128xf32>
    %367 = arith.index_cast %1 : i32 to index
    %c0_17 = arith.constant 0 : index
    %368 = vector.load %arg3[%367, %c0_17] : memref<8x128xf32, #tpu.memory_space<vmem>>, vector<8x128xf32>
    tpu.vector_store %arg3[%367, %c0_17], %366 {strides = array<i32>} : memref<8x128xf32, #tpu.memory_space<vmem>>, vector<8x128xf32>,
    %c1_i32 = arith.constant 1 : i32
    return
  }
  func.func @transform_0(%arg0: i32) -> i32 {
    %c0_i32 = arith.constant 0 : i32
    %c0_i32_0 = arith.constant 0 : i32
    return %c0_i32 : i32
  }
  func.func @transform_1(%arg0: i32) -> (i32, i32, i32) {
    %c0_i32 = arith.constant 0 : i32
    %c0_i32_0 = arith.constant 0 : i32
    %c0_i32_1 = arith.constant 0 : i32
    return %c0_i32, %arg0, %c0_i32_0 : i32, i32, i32
  }
  func.func @transform_2(%arg0: i32) -> (i32, i32) {
    %c0_i32 = arith.constant 0 : i32
    %c0_i32_0 = arith.constant 0 : i32
    return %arg0, %c0_i32 : i32, i32
  }
}

</mosaic_0001>

<llo_original>
// kernel: tpu_custom_call.1
$region0: #{tpu_custom_call.1}
  #allocation0 [shape = 'u32[]', space=smem, size = 0x4, offset = 0x4, fixed_abs, tag = 'smem constant byte address 0x4 - core index']
  #allocation1 [shape = 'u32[72,128]{1,0:T(1,128)}', space=vmem, size = 0x9000, scoped, tag = 'internal scratch']
  %s0 = inlined_call_operand.hbm [shape: f32[87], index: 0, kind: input, shape index: {}]
  %s1 = inlined_call_operand.hbm [shape: f32[8,16,128], index: 1, kind: input, shape index: {}]
  %s2 = inlined_call_operand.hbm [shape: f32[16,128], index: 2, kind: output, shape index: {}]
  %s3 = sld [smem:[#allocation0]]
  $region49: #{tpu_custom_call.1} parent=0
    _
  %s5 = ssub.s32 1, %s3
  %s6 = scalar_select 0, %s5, %s3
  $region1: #{tpu_custom_call.1} parent=0
    #allocation2 [shape = 'u8[512]{0}', space=smem, size = 0x200, scoped, tag = 'input window, operand 0, single buffered']
    #allocation3 [shape = 's32[2]{0}', space=sflag, size = 0x8, scoped, tag = 'scoped memory for tpu_custom_call.1']
    #allocation4 [shape = 's32[2]{0}', space=sflag, size = 0x8, scoped, tag = 'scoped memory for tpu_custom_call.1']
    #allocation5 [shape = 's32[2]{0}', space=sflag, size = 0x8, scoped, tag = 'scoped memory for tpu_custom_call.1']
    #allocation6 [shape = 'u8[65536]{0}', space=vmem, size = 0x10000, scoped, tag = 'input window, operand 1']
    #allocation7 [shape = 'u8[8192]{0}', space=vmem, size = 0x2000, scoped, tag = 'output window, operand 0']
    %7 = vsyncpa [#allocation5], 0
    %8 = vsyncpa [#allocation3], 0
    %s9 = scalar_lea.sflag [#allocation3], 1
    %10 = vsyncpa %s9, 0
    %11 = vsyncpa [#allocation4], 0
    %s12 = scalar_lea.sflag [#allocation4], 1
    %13 = vsyncpa %s12, 0
    loop: start=0, step=1, limit=4
    $region2: #{tpu_custom_call.1} parent=1 // loop_pre_header
      _
    $region3: #{tpu_custom_call.1} parent=1 // loop_header
      %s15 = sphi 0, %s19
      %p16 = scmp.ge.s32.totalorder %s15, 4
      %s23 = sphi 0, %s23
      %s25 = sphi 0, %s23
      %s26 = sphi 0, %s25
      %s40 = sphi 0, %s26
      %s46 = sphi 0, %s48
      %s49 = sphi 0, %s46
      %s50 = sphi 0, %s49
      %s66 = sphi 0, %s50
      %s72 = sphi 0, %s74
      %s75 = sphi 0, %s72
      %s76 = sphi 0, %s75
      %s92 = sphi 0, %s76
    $region4: #{tpu_custom_call.1} parent=1 // loop_header_branch
      %18 = sbr.rel (%p16) target = $region8
    $region5: #{tpu_custom_call.1} parent=1 // loop_body
      %s20 = ssub.s32 %s15, 1
      %s21 = ssub.s32 %s15, 2
      %s22 = sadd.s32 %s15, 1
      %s24 = sadd.s32 %s23, 1
      %p27 = scmp.eq.s32.totalorder %s15, 1
      %p28 = scmp.ne.s32.totalorder %s23, %s25
      %p29 = scmp.eq.s32.totalorder %s15, 0
      %p30 = por %p28, %p29
      %p31 = scmp.ne.s32.totalorder %s23, %s25
      %p32 = scmp.eq.s32.totalorder %s20, 1
      %p33 = por %p31, %p32
      %p34 = scmp.ne.s32.totalorder %s25, %s26
      %p35 = scmp.eq.s32.totalorder %s20, 0
      %p36 = por %p34, %p35
      %p37 = scmp.ne.s32.totalorder %s25, %s26
      %p38 = scmp.eq.s32.totalorder %s21, 1
      %p39 = por %p37, %p38
      %p41 = scmp.ne.s32.totalorder %s26, %s40
      %p42 = scmp.eq.s32.totalorder %s21, 0
      %p43 = por %p41, %p42
      %s44 = ssub.s32 %s15, %s22
      %p45 = scmp.eq.s32.totalorder %s44, 0
      %s47 = sadd.s32 %s46, 1
      %s48 = scalar_select %p45, %s46, %s47
      %p51 = pneg %p45
      %p52 = scmp.eq.s32.totalorder %s15, 1
      %p53 = por %p51, %p52
      %p54 = scmp.ne.s32.totalorder %s46, %s49
      %p55 = scmp.eq.s32.totalorder %s15, 0
      %p56 = por %p54, %p55
      %p57 = scmp.ne.s32.totalorder %s46, %s49
      %p58 = scmp.eq.s32.totalorder %s20, 1
      %p59 = por %p57, %p58
      %p60 = scmp.ne.s32.totalorder %s49, %s50
      %p61 = scmp.eq.s32.totalorder %s20, 0
      %p62 = por %p60, %p61
      %p63 = scmp.ne.s32.totalorder %s49, %s50
      %p64 = scmp.eq.s32.totalorder %s21, 1
      %p65 = por %p63, %p64
      %p67 = scmp.ne.s32.totalorder %s50, %s66
      %p68 = scmp.eq.s32.totalorder %s21, 0
      %p69 = por %p67, %p68
      %s70 = ssub.s32 %s15, %s22
      %p71 = scmp.eq.s32.totalorder %s70, 0
      %s73 = sadd.s32 %s72, 1
      %s74 = scalar_select %p71, %s72, %s73
      %p77 = pneg %p71
      %p78 = scmp.eq.s32.totalorder %s15, 1
      %p79 = por %p77, %p78
      %p80 = scmp.ne.s32.totalorder %s72, %s75
      %p81 = scmp.eq.s32.totalorder %s15, 0
      %p82 = por %p80, %p81
      %p83 = scmp.ne.s32.totalorder %s72, %s75
      %p84 = scmp.eq.s32.totalorder %s20, 1
      %p85 = por %p83, %p84
      %p86 = scmp.ne.s32.totalorder %s75, %s76
      %p87 = scmp.eq.s32.totalorder %s20, 0
      %p88 = por %p86, %p87
      %p89 = scmp.ne.s32.totalorder %s75, %s76
      %p90 = scmp.eq.s32.totalorder %s21, 1
      %p91 = por %p89, %p90
      %p93 = scmp.ne.s32.totalorder %s76, %s92
      %p94 = scmp.eq.s32.totalorder %s21, 0
      %p95 = por %p93, %p94
      %p96 = scmp.le.s32.totalorder 1, %s15
      %p97 = scmp.lt.s32.totalorder %s15, 3
      %p98 = pnand %p96, %p97
      %p99 = pneg %p98
      // Predicated region
      $region9: #{tpu_custom_call.1} parent=5 // pred_check
        _
      $region10: #{tpu_custom_call.1} parent=5 // pred_check_branch
        %101 = sbr.rel (%p98) target = $region12
      $region11: #{tpu_custom_call.1} parent=5 // pred_region
        %s102 = ssub.s32 %s15, 1
        // Predicated region
        $region13: #{tpu_custom_call.1} parent=11 // pred_check
          %p103 = pneg %p36
        $region14: #{tpu_custom_call.1} parent=11 // pred_check_branch
          %105 = sbr.rel (%p103) target = $region16
        $region15: #{tpu_custom_call.1} parent=11 // pred_region
          %107 = vsyncadd [#allocation5], 0
          %s109 = sshll.u32 %s0, 4
          %s110 = int_to_ptr.hbm [resolvable:$true] %s109
          %112 = dma.hbm_to_smem %s110, 16, [#allocation2], [#allocation5]
        $region16: #{tpu_custom_call.1} parent=11 // pred_fallthru
          _
      $region12: #{tpu_custom_call.1} parent=5 // pred_fallthru
        _
      %p113 = scmp.lt.s32.totalorder %s15, 2
      // Predicated region
      $region17: #{tpu_custom_call.1} parent=5 // pred_check
        %p114 = pneg %p113
      $region18: #{tpu_custom_call.1} parent=5 // pred_check_branch
        %116 = sbr.rel (%p114) target = $region20
      $region19: #{tpu_custom_call.1} parent=5 // pred_region
        // Predicated region
        $region21: #{tpu_custom_call.1} parent=19 // pred_check
          %p117 = pneg %p56
        $region22: #{tpu_custom_call.1} parent=19 // pred_check_branch
          %119 = sbr.rel (%p117) target = $region24
        $region23: #{tpu_custom_call.1} parent=19 // pred_region
          %s120 = sand.u32 %s46, 1
          %s121 = scalar_lea.sflag [#allocation3], %s120
          %s122 = sand.u32 %s46, 1
          %s123 = smul.addr %s122, 64
          %s124 = scalar_lea.vmem [#allocation6], %s123
          %126 = vsyncadd %s121, 0
          %s127 = smul.addr %s15, 8
          %s128 = scalar_lea.hbm %s1, %s127
          %s129 = sshll.u32 %s128, 4
          %s130 = int_to_ptr.hbm [resolvable:$true] %s129
          %s131 = sshll.u32 %s124, 4
          %s132 = int_to_ptr.vmem [resolvable:$true] %s131
          %137 = dma.hbm_to_vmem [thread:$0]  %s130, 1024, %s132, %s121, 256, 128, 8
        $region24: #{tpu_custom_call.1} parent=19 // pred_fallthru
          _
      $region20: #{tpu_custom_call.1} parent=5 // pred_fallthru
        _
      %p138 = scmp.le.s32.totalorder 1, %s15
      %p139 = scmp.lt.s32.totalorder %s15, 3
      %p140 = pnand %p138, %p139
      %p141 = pneg %p140
      // Predicated region
      $region25: #{tpu_custom_call.1} parent=5 // pred_check
        _
      $region26: #{tpu_custom_call.1} parent=5 // pred_check_branch
        %143 = sbr.rel (%p140) target = $region28
      $region27: #{tpu_custom_call.1} parent=5 // pred_region
        %s144 = ssub.s32 %s15, 1
        // Predicated region
        $region29: #{tpu_custom_call.1} parent=27 // pred_check
          %p145 = pneg %p36
        $region30: #{tpu_custom_call.1} parent=27 // pred_check_branch
          %147 = sbr.rel (%p145) target = $region32
        $region31: #{tpu_custom_call.1} parent=27 // pred_region
          %149 = dma.done [#allocation5], 16
        $region32: #{tpu_custom_call.1} parent=27 // pred_fallthru
          _
        %s150 = sand.u32 %s49, 1
        %s151 = scalar_lea.sflag [#allocation3], %s150
        %s152 = sand.u32 %s49, 1
        %s153 = smul.addr %s152, 64
        %s154 = scalar_lea.vmem [#allocation6], %s153
        // Predicated region
        $region33: #{tpu_custom_call.1} parent=27 // pred_check
          %p155 = pneg %p62
        $region34: #{tpu_custom_call.1} parent=27 // pred_check_branch
          %157 = sbr.rel (%p155) target = $region36
        $region35: #{tpu_custom_call.1} parent=27 // pred_region
          %159 = dma.done %s151, 1024
        $region36: #{tpu_custom_call.1} parent=27 // pred_fallthru
          _
        %160 = sfence
        %p161 = pneg %p36
        %p162 = pneg %p33
        %s163 = sand.u32 %s49, 1
        %s164 = scalar_lea.sflag [#allocation3], %s163
        %s165 = sand.u32 %s49, 1
        %s166 = smul.addr %s165, 64
        %s167 = scalar_lea.vmem [#allocation6], %s166
        %p168 = pneg %p62
        %p169 = pneg %p59
        %p170 = pneg %p88
        %p171 = pneg %p85
        %s172 = sand.u32 %s75, 1
        %s173 = scalar_lea.sflag [#allocation4], %s172
        %s174 = sand.u32 %s75, 1
        %s175 = smul.addr %s174, 8
        %s176 = scalar_lea.vmem [#allocation7], %s175
        %v177 = vld [vmem:[%s154] sm:$0xff]
        %s178 = sadd.s32 0, 8
        %s179 = scalar_lea.vmem %s154, %s178 [#allocation6]
        %v180 = vld [vmem:[%s179] sm:$0xff]
        %s181 = sadd.s32 0, 16
        %s182 = scalar_lea.vmem %s154, %s181 [#allocation6]
        %v183 = vld [vmem:[%s182] sm:$0xff]
        %s184 = sadd.s32 0, 24
        %s185 = scalar_lea.vmem %s154, %s184 [#allocation6]
        %v186 = vld [vmem:[%s185] sm:$0xff]
        %s187 = sadd.s32 0, 32
        %s188 = scalar_lea.vmem %s154, %s187 [#allocation6]
        %v189 = vld [vmem:[%s188] sm:$0xff]
        %s190 = sadd.s32 0, 40
        %s191 = scalar_lea.vmem %s154, %s190 [#allocation6]
        %v192 = vld [vmem:[%s191] sm:$0xff]
        %s193 = sadd.s32 0, 48
        %s194 = scalar_lea.vmem %s154, %s193 [#allocation6]
        %v195 = vld [vmem:[%s194] sm:$0xff]
        %s196 = sadd.s32 0, 56
        %s197 = scalar_lea.vmem %s154, %s196 [#allocation6]
        %v198 = vld [vmem:[%s197] sm:$0xff]
        %s199 = sld [smem:[#allocation2]]
        %v200 = vstv %s199
        %v201 = vmul.f32 %v177, %v200
        %s202 = sld [smem:[#allocation2 + $0x30]]
        %v203 = vstv %s202
        %v204 = vadd.f32 %v201, %v203
        %s205 = sld [smem:[#allocation2 + $0x6]]
        %v206 = vstv %s205
        %v207 = vmul.f32 %v180, %v206
        %v208 = vadd.f32 %v204, %v207
        %s209 = sld [smem:[#allocation2 + $0xc]]
        %v210 = vstv %s209
        %v211 = vmul.f32 %v183, %v210
        %v212 = vadd.f32 %v208, %v211
        %s213 = sld [smem:[#allocation2 + $0x12]]
        %v214 = vstv %s213
        %v215 = vmul.f32 %v186, %v214
        %v216 = vadd.f32 %v212, %v215
        %s217 = sld [smem:[#allocation2 + $0x18]]
        %v218 = vstv %s217
        %v219 = vmul.f32 %v189, %v218
        %v220 = vadd.f32 %v216, %v219
        %s221 = sld [smem:[#allocation2 + $0x1e]]
        %v222 = vstv %s221
        %v223 = vmul.f32 %v192, %v222
        %v224 = vadd.f32 %v220, %v223
        %s225 = sld [smem:[#allocation2 + $0x24]]
        %v226 = vstv %s225
        %v227 = vmul.f32 %v195, %v226
        %v228 = vadd.f32 %v224, %v227
        %s229 = sld [smem:[#allocation2 + $0x2a]]
        %v230 = vstv %s229
        %v231 = vmul.f32 %v198, %v230
        %v232 = vadd.f32 %v228, %v231
        %s233 = sld [smem:[#allocation2 + $0x1]]
        %v234 = vstv %s233
        %v235 = vmul.f32 %v177, %v234
        %s236 = sld [smem:[#allocation2 + $0x31]]
        %v237 = vstv %s236
        %v238 = vadd.f32 %v235, %v237
        %s239 = sld [smem:[#allocation2 + $0x7]]
        %v240 = vstv %s239
        %v241 = vmul.f32 %v180, %v240
        %v242 = vadd.f32 %v238, %v241
        %s243 = sld [smem:[#allocation2 + $0xd]]
        %v244 = vstv %s243
        %v245 = vmul.f32 %v183, %v244
        %v246 = vadd.f32 %v242, %v245
        %s247 = sld [smem:[#allocation2 + $0x13]]
        %v248 = vstv %s247
        %v249 = vmul.f32 %v186, %v248
        %v250 = vadd.f32 %v246, %v249
        %s251 = sld [smem:[#allocation2 + $0x19]]
        %v252 = vstv %s251
        %v253 = vmul.f32 %v189, %v252
        %v254 = vadd.f32 %v250, %v253
        %s255 = sld [smem:[#allocation2 + $0x1f]]
        %v256 = vstv %s255
        %v257 = vmul.f32 %v192, %v256
        %v258 = vadd.f32 %v254, %v257
        %s259 = sld [smem:[#allocation2 + $0x25]]
        %v260 = vstv %s259
        %v261 = vmul.f32 %v195, %v260
        %v262 = vadd.f32 %v258, %v261
        %s263 = sld [smem:[#allocation2 + $0x2b]]
        %v264 = vstv %s263
        %v265 = vmul.f32 %v198, %v264
        %v266 = vadd.f32 %v262, %v265
        %s267 = sld [smem:[#allocation2 + $0x2]]
        %v268 = vstv %s267
        %v269 = vmul.f32 %v177, %v268
        %s270 = sld [smem:[#allocation2 + $0x32]]
        %v271 = vstv %s270
        %v272 = vadd.f32 %v269, %v271
        %s273 = sld [smem:[#allocation2 + $0x8]]
        %v274 = vstv %s273
        %v275 = vmul.f32 %v180, %v274
        %v276 = vadd.f32 %v272, %v275
        %s277 = sld [smem:[#allocation2 + $0xe]]
        %v278 = vstv %s277
        %v279 = vmul.f32 %v183, %v278
        %v280 = vadd.f32 %v276, %v279
        %s281 = sld [smem:[#allocation2 + $0x14]]
        %v282 = vstv %s281
        %v283 = vmul.f32 %v186, %v282
        %v284 = vadd.f32 %v280, %v283
        %s285 = sld [smem:[#allocation2 + $0x1a]]
        %v286 = vstv %s285
        %v287 = vmul.f32 %v189, %v286
        %v288 = vadd.f32 %v284, %v287
        %s289 = sld [smem:[#allocation2 + $0x20]]
        %v290 = vstv %s289
        %v291 = vmul.f32 %v192, %v290
        %v292 = vadd.f32 %v288, %v291
        %s293 = sld [smem:[#allocation2 + $0x26]]
        %v294 = vstv %s293
        %v295 = vmul.f32 %v195, %v294
        %v296 = vadd.f32 %v292, %v295
        %s297 = sld [smem:[#allocation2 + $0x2c]]
        %v298 = vstv %s297
        %v299 = vmul.f32 %v198, %v298
        %v300 = vadd.f32 %v296, %v299
        %s301 = sld [smem:[#allocation2 + $0x3]]
        %v302 = vstv %s301
        %v303 = vmul.f32 %v177, %v302
        %s304 = sld [smem:[#allocation2 + $0x33]]
        %v305 = vstv %s304
        %v306 = vadd.f32 %v303, %v305
        %s307 = sld [smem:[#allocation2 + $0x9]]
        %v308 = vstv %s307
        %v309 = vmul.f32 %v180, %v308
        %v310 = vadd.f32 %v306, %v309
        %s311 = sld [smem:[#allocation2 + $0xf]]
        %v312 = vstv %s311
        %v313 = vmul.f32 %v183, %v312
        %v314 = vadd.f32 %v310, %v313
        %s315 = sld [smem:[#allocation2 + $0x15]]
        %v316 = vstv %s315
        %v317 = vmul.f32 %v186, %v316
        %v318 = vadd.f32 %v314, %v317
        %s319 = sld [smem:[#allocation2 + $0x1b]]
        %v320 = vstv %s319
        %v321 = vmul.f32 %v189, %v320
        %v322 = vadd.f32 %v318, %v321
        %s323 = sld [smem:[#allocation2 + $0x21]]
        %v324 = vstv %s323
        %v325 = vmul.f32 %v192, %v324
        %v326 = vadd.f32 %v322, %v325
        %s327 = sld [smem:[#allocation2 + $0x27]]
        %v328 = vstv %s327
        %v329 = vmul.f32 %v195, %v328
        %v330 = vadd.f32 %v326, %v329
        %s331 = sld [smem:[#allocation2 + $0x2d]]
        %v332 = vstv %s331
        %v333 = vmul.f32 %v198, %v332
        %v334 = vadd.f32 %v330, %v333
        %s335 = sld [smem:[#allocation2 + $0x4]]
        %v336 = vstv %s335
        %v337 = vmul.f32 %v177, %v336
        %s338 = sld [smem:[#allocation2 + $0x34]]
        %v339 = vstv %s338
        %v340 = vadd.f32 %v337, %v339
        %s341 = sld [smem:[#allocation2 + $0xa]]
        %v342 = vstv %s341
        %v343 = vmul.f32 %v180, %v342
        %v344 = vadd.f32 %v340, %v343
        %s345 = sld [smem:[#allocation2 + $0x10]]
        %v346 = vstv %s345
        %v347 = vmul.f32 %v183, %v346
        %v348 = vadd.f32 %v344, %v347
        %s349 = sld [smem:[#allocation2 + $0x16]]
        %v350 = vstv %s349
        %v351 = vmul.f32 %v186, %v350
        %v352 = vadd.f32 %v348, %v351
        %s353 = sld [smem:[#allocation2 + $0x1c]]
        %v354 = vstv %s353
        %v355 = vmul.f32 %v189, %v354
        %v356 = vadd.f32 %v352, %v355
        %s357 = sld [smem:[#allocation2 + $0x22]]
        %v358 = vstv %s357
        %v359 = vmul.f32 %v192, %v358
        %v360 = vadd.f32 %v356, %v359
        %s361 = sld [smem:[#allocation2 + $0x28]]
        %v362 = vstv %s361
        %v363 = vmul.f32 %v195, %v362
        %v364 = vadd.f32 %v360, %v363
        %s365 = sld [smem:[#allocation2 + $0x2e]]
        %v366 = vstv %s365
        %v367 = vmul.f32 %v198, %v366
        %v368 = vadd.f32 %v364, %v367
        %s369 = sld [smem:[#allocation2 + $0x5]]
        %v370 = vstv %s369
        %v371 = vmul.f32 %v177, %v370
        %s372 = sld [smem:[#allocation2 + $0x35]]
        %v373 = vstv %s372
        %v374 = vadd.f32 %v371, %v373
        %s375 = sld [smem:[#allocation2 + $0xb]]
        %v376 = vstv %s375
        %v377 = vmul.f32 %v180, %v376
        %v378 = vadd.f32 %v374, %v377
        %s379 = sld [smem:[#allocation2 + $0x11]]
        %v380 = vstv %s379
        %v381 = vmul.f32 %v183, %v380
        %v382 = vadd.f32 %v378, %v381
        %s383 = sld [smem:[#allocation2 + $0x17]]
        %v384 = vstv %s383
        %v385 = vmul.f32 %v186, %v384
        %v386 = vadd.f32 %v382, %v385
        %s387 = sld [smem:[#allocation2 + $0x1d]]
        %v388 = vstv %s387
        %v389 = vmul.f32 %v189, %v388
        %v390 = vadd.f32 %v386, %v389
        %s391 = sld [smem:[#allocation2 + $0x23]]
        %v392 = vstv %s391
        %v393 = vmul.f32 %v192, %v392
        %v394 = vadd.f32 %v390, %v393
        %s395 = sld [smem:[#allocation2 + $0x29]]
        %v396 = vstv %s395
        %v397 = vmul.f32 %v195, %v396
        %v398 = vadd.f32 %v394, %v397
        %s399 = sld [smem:[#allocation2 + $0x2f]]
        %v400 = vstv %s399
        %v401 = vmul.f32 %v198, %v400
        %v402 = vadd.f32 %v398, %v401
        %v403 = vtanh.pop %v232
        %v404 = vtanh.pop %v266
        %v405 = vtanh.pop %v300
        %v406 = vtanh.pop %v334
        %v407 = vtanh.pop %v368
        %v408 = vtanh.pop %v402
        %s409 = sld [smem:[#allocation2 + $0x36]]
        %v410 = vstv %s409
        %v411 = vmul.f32 %v403, %v410
        %s412 = sld [smem:[#allocation2 + $0x4e]]
        %v413 = vstv %s412
        %v414 = vadd.f32 %v411, %v413
        %s415 = sld [smem:[#allocation2 + $0x3a]]
        %v416 = vstv %s415
        %v417 = vmul.f32 %v404, %v416
        %v418 = vadd.f32 %v414, %v417
        %s419 = sld [smem:[#allocation2 + $0x3e]]
        %v420 = vstv %s419
        %v421 = vmul.f32 %v405, %v420
        %v422 = vadd.f32 %v418, %v421
        %s423 = sld [smem:[#allocation2 + $0x42]]
        %v424 = vstv %s423
        %v425 = vmul.f32 %v406, %v424
        %v426 = vadd.f32 %v422, %v425
        %s427 = sld [smem:[#allocation2 + $0x46]]
        %v428 = vstv %s427
        %v429 = vmul.f32 %v407, %v428
        %v430 = vadd.f32 %v426, %v429
        %s431 = sld [smem:[#allocation2 + $0x4a]]
        %v432 = vstv %s431
        %v433 = vmul.f32 %v408, %v432
        %v434 = vadd.f32 %v430, %v433
        %s435 = sld [smem:[#allocation2 + $0x37]]
        %v436 = vstv %s435
        %v437 = vmul.f32 %v403, %v436
        %s438 = sld [smem:[#allocation2 + $0x4f]]
        %v439 = vstv %s438
        %v440 = vadd.f32 %v437, %v439
        %s441 = sld [smem:[#allocation2 + $0x3b]]
        %v442 = vstv %s441
        %v443 = vmul.f32 %v404, %v442
        %v444 = vadd.f32 %v440, %v443
        %s445 = sld [smem:[#allocation2 + $0x3f]]
        %v446 = vstv %s445
        %v447 = vmul.f32 %v405, %v446
        %v448 = vadd.f32 %v444, %v447
        %s449 = sld [smem:[#allocation2 + $0x43]]
        %v450 = vstv %s449
        %v451 = vmul.f32 %v406, %v450
        %v452 = vadd.f32 %v448, %v451
        %s453 = sld [smem:[#allocation2 + $0x47]]
        %v454 = vstv %s453
        %v455 = vmul.f32 %v407, %v454
        %v456 = vadd.f32 %v452, %v455
        %s457 = sld [smem:[#allocation2 + $0x4b]]
        %v458 = vstv %s457
        %v459 = vmul.f32 %v408, %v458
        %v460 = vadd.f32 %v456, %v459
        %s461 = sld [smem:[#allocation2 + $0x38]]
        %v462 = vstv %s461
        %v463 = vmul.f32 %v403, %v462
        %s464 = sld [smem:[#allocation2 + $0x50]]
        %v465 = vstv %s464
        %v466 = vadd.f32 %v463, %v465
        %s467 = sld [smem:[#allocation2 + $0x3c]]
        %v468 = vstv %s467
        %v469 = vmul.f32 %v404, %v468
        %v470 = vadd.f32 %v466, %v469
        %s471 = sld [smem:[#allocation2 + $0x40]]
        %v472 = vstv %s471
        %v473 = vmul.f32 %v405, %v472
        %v474 = vadd.f32 %v470, %v473
        %s475 = sld [smem:[#allocation2 + $0x44]]
        %v476 = vstv %s475
        %v477 = vmul.f32 %v406, %v476
        %v478 = vadd.f32 %v474, %v477
        %s479 = sld [smem:[#allocation2 + $0x48]]
        %v480 = vstv %s479
        %v481 = vmul.f32 %v407, %v480
        %v482 = vadd.f32 %v478, %v481
        %s483 = sld [smem:[#allocation2 + $0x4c]]
        %v484 = vstv %s483
        %v485 = vmul.f32 %v408, %v484
        %v486 = vadd.f32 %v482, %v485
        %s487 = sld [smem:[#allocation2 + $0x39]]
        %v488 = vstv %s487
        %v489 = vmul.f32 %v403, %v488
        %s490 = sld [smem:[#allocation2 + $0x51]]
        %v491 = vstv %s490
        %v492 = vadd.f32 %v489, %v491
        %s493 = sld [smem:[#allocation2 + $0x3d]]
        %v494 = vstv %s493
        %v495 = vmul.f32 %v404, %v494
        %v496 = vadd.f32 %v492, %v495
        %s497 = sld [smem:[#allocation2 + $0x41]]
        %v498 = vstv %s497
        %v499 = vmul.f32 %v405, %v498
        %v500 = vadd.f32 %v496, %v499
        %s501 = sld [smem:[#allocation2 + $0x45]]
        %v502 = vstv %s501
        %v503 = vmul.f32 %v406, %v502
        %v504 = vadd.f32 %v500, %v503
        %s505 = sld [smem:[#allocation2 + $0x49]]
        %v506 = vstv %s505
        %v507 = vmul.f32 %v407, %v506
        %v508 = vadd.f32 %v504, %v507
        %s509 = sld [smem:[#allocation2 + $0x4d]]
        %v510 = vstv %s509
        %v511 = vmul.f32 %v408, %v510
        %v512 = vadd.f32 %v508, %v511
        %v513 = vtanh.pop %v434
        %v514 = vtanh.pop %v460
        %v515 = vtanh.pop %v486
        %v516 = vtanh.pop %v512
        %s517 = sld [smem:[#allocation2 + $0x52]]
        %v518 = vstv %s517
        %v519 = vmul.f32 %v513, %v518
        %s520 = sld [smem:[#allocation2 + $0x56]]
        %v521 = vstv %s520
        %v522 = vadd.f32 %v519, %v521
        %s523 = sld [smem:[#allocation2 + $0x53]]
        %v524 = vstv %s523
        %v525 = vmul.f32 %v514, %v524
        %v526 = vadd.f32 %v522, %v525
        %s527 = sld [smem:[#allocation2 + $0x54]]
        %v528 = vstv %s527
        %v529 = vmul.f32 %v515, %v528
        %v530 = vadd.f32 %v526, %v529
        %s531 = sld [smem:[#allocation2 + $0x55]]
        %v532 = vstv %s531
        %v533 = vmul.f32 %v516, %v532
        %v534 = vadd.f32 %v530, %v533
        %v535 = vtanh.pop %v534
        %v536 = vmul.f32 %v535, 0.5
        %v537 = vadd.f32 %v536, 0.5
        %538 = vst [vmem:[%s176] sm:$0xff] %v537
        %s539 = sand.u32 %s75, 1
        %s540 = scalar_lea.sflag [#allocation4], %s539
        %s541 = sand.u32 %s75, 1
        %s542 = smul.addr %s541, 8
        %s543 = scalar_lea.vmem [#allocation7], %s542
        // Predicated region
        $region37: #{tpu_custom_call.1} parent=27 // pred_check
          %p544 = pneg %p85
        $region38: #{tpu_custom_call.1} parent=27 // pred_check_branch
          %546 = sbr.rel (%p544) target = $region40
        $region39: #{tpu_custom_call.1} parent=27 // pred_region
          %548 = vsyncadd %s540, 0
          %s549 = smul.addr %s20, 8
          %s550 = scalar_lea.hbm %s2, %s549
          %s552 = sshll.u32 %s543, 4
          %s553 = int_to_ptr.vmem [resolvable:$true] %s552
          %s554 = sshll.u32 %s550, 4
          %s555 = int_to_ptr.hbm [resolvable:$true] %s554
          %557 = dma.vmem_to_hbm [thread:$0]  %s553, 128, %s555, %s540
        $region40: #{tpu_custom_call.1} parent=27 // pred_fallthru
          _
      $region28: #{tpu_custom_call.1} parent=5 // pred_fallthru
        _
      %p558 = scmp.le.s32.totalorder 2, %s15
      // Predicated region
      $region41: #{tpu_custom_call.1} parent=5 // pred_check
        %p559 = pneg %p558
      $region42: #{tpu_custom_call.1} parent=5 // pred_check_branch
        %561 = sbr.rel (%p559) target = $region44
      $region43: #{tpu_custom_call.1} parent=5 // pred_region
        %s562 = ssub.s32 %s15, 2
        // Predicated region
        $region45: #{tpu_custom_call.1} parent=43 // pred_check
          %p563 = pneg %p91
        $region46: #{tpu_custom_call.1} parent=43 // pred_check_branch
          %565 = sbr.rel (%p563) target = $region48
        $region47: #{tpu_custom_call.1} parent=43 // pred_region
          %s566 = sand.u32 %s76, 1
          %s567 = scalar_lea.sflag [#allocation4], %s566
          %s568 = sand.u32 %s76, 1
          %s569 = smul.addr %s568, 8
          %s570 = scalar_lea.vmem [#allocation7], %s569
          %572 = dma.done %s567, 128
        $region48: #{tpu_custom_call.1} parent=43 // pred_fallthru
          _
      $region44: #{tpu_custom_call.1} parent=5 // pred_fallthru
        _
    $region6: #{tpu_custom_call.1} parent=1 // loop_footer
      %s19 = sadd.s32 1, %s15
    $region7: #{tpu_custom_call.1} parent=1 // loop_footer_branch
      %14 = sbr.rel target = $region3
    $region8: #{tpu_custom_call.1} parent=1 // loop_exit
      _
    %573 = vsyncpa [#allocation3], 1
    %s574 = scalar_lea.sflag [#allocation3], 1
    %575 = vsyncpa %s574, 1
    %576 = vsyncpa [#allocation4], 1
    %s577 = scalar_lea.sflag [#allocation4], 1
    %578 = vsyncpa %s577, 1
    %579 = vsyncpa [#allocation5], 1
    %s580 = scalar_lea.sflag [#allocation5], 1
    %581 = vsyncpa %s580, 1

</llo_original>
